<compile_context>
chip_gen: v5e
topology: v5e:2x2
jax: 0.10.0
libtpu: 0.0.40
codegen_flags: <defaults>
</compile_context>

<pallas_src>
import functools

import jax
import jax.numpy as jnp
from jax.experimental import pallas as pl
from jax.experimental.pallas import tpu as pltpu


def _pool_round_kernel(x_ref, pmat_ref, xq_ref, pooled_ref, bits_ref,
                       *, levels: float, inv_area: float):
    # x_ref block: (Bp, H*W) — Bp image planes, each plane flattened on lanes.
    x = x_ref[...].astype(jnp.float32)

    # RoundQuantizer on the ORIGINAL (full-resolution) input.
    xq = jnp.round(x)
    r = jnp.round(x * levels + 0.5 * levels - xq * levels)
    # r is always in [0, levels]; `% levels` reduces to one select.
    bits = jnp.where(r >= levels, r - levels, r)

    # 2x2 stride-2 average pool: one matmul with the resident one-hot pooling
    # matrix (H*W, Ho*Wo), then scale by 1/area.  HIGHEST precision keeps the
    # f32 pair sums exact so rounding boundaries match a direct mean.
    pooled = jnp.dot(x, pmat_ref[...],
                     preferred_element_type=jnp.float32,
                     precision=jax.lax.Precision.HIGHEST) * inv_area

    xq_ref[...] = xq.astype(xq_ref.dtype)
    pooled_ref[...] = pooled.astype(pooled_ref.dtype)
    bits_ref[...] = bits.astype(bits_ref.dtype)


def avg_pooling(x, *, scale: int = 2, levels: int = 4,
                target_block_bytes: int = 4 * 1024 * 1024):
    """Returns (x_rounded, x_pooled, round_bits) with the module's semantics (NCHW)."""
    N, C, H, W = x.shape
    assert H % scale == 0 and W % scale == 0
    Ho, Wo = H // scale, W // scale
    HW, HoWo = H * W, Ho * Wo
    P = N * C
    itemsize = jnp.dtype(x.dtype).itemsize

    # Free bitcast: planes on sublanes, a whole flattened plane on lanes.
    x2 = x.reshape(P, HW)

    # Planes per grid step: target a few MiB of input per block, keep the
    # sublane dim a multiple of 8, and zero-pad the plane count rather than
    # falling back to tiny divisors of N*C.
    target_rows = max(1, target_block_bytes // (HW * itemsize))
    if P <= 8:
        Bp = P                                        # block == full array dim
    else:
        Bp = max(8, (min(P, target_rows) // 8) * 8)   # multiple of 8 sublanes
    G = -(-P // Bp)
    Ppad = G * Bp
    if Ppad != P:
        x2 = jnp.pad(x2, ((0, Ppad - P), (0, 0)))

    # One-hot pooling matrix: pmat[k, o] = 1 iff flat pixel k pools into o.
    k = jnp.arange(HW, dtype=jnp.int32)
    src_out = ((k // W) // scale) * Wo + (k % W) // scale
    pmat = (src_out[:, None] == jnp.arange(HoWo, dtype=jnp.int32)[None, :]
            ).astype(jnp.float32)                                  # (HW, HoWo)

    kernel = functools.partial(
        _pool_round_kernel,
        levels=float(levels),
        inv_area=1.0 / float(scale * scale))

    out_full = jax.ShapeDtypeStruct((Ppad, HW), x.dtype)
    out_pool = jax.ShapeDtypeStruct((Ppad, HoWo), x.dtype)

    xq, pooled, bits = pl.pallas_call(
        kernel,
        out_shape=(out_full, out_pool, out_full),
        grid_spec=pltpu.PrefetchScalarGridSpec(
            num_scalar_prefetch=0,
            grid=(G,),
            in_specs=[
                pl.BlockSpec((Bp, HW), lambda g: (g, 0)),
                pl.BlockSpec((HW, HoWo), lambda g: (0, 0)),  # resident constant
            ],
            out_specs=[
                pl.BlockSpec((Bp, HW), lambda g: (g, 0)),
                pl.BlockSpec((Bp, HoWo), lambda g: (g, 0)),
                pl.BlockSpec((Bp, HW), lambda g: (g, 0)),
            ],
        ),
        compiler_params=pltpu.CompilerParams(
            dimension_semantics=("parallel",),
            vmem_limit_bytes=64 * 1024 * 1024),
    )(x2, pmat)

    if Ppad != P:
        xq, pooled, bits = xq[:P], pooled[:P], bits[:P]

    # Free reshapes back to NCHW; match torch return order (x, x_, round_bits).
    return (xq.reshape(N, C, H, W),
            pooled.reshape(N, C, Ho, Wo),
            bits.reshape(N, C, H, W))


if __name__ == "__main__":
    key = jax.random.PRNGKey(0)
    # NCHW input, small shape consistent with the module's conv-style usage.
    x = jax.random.normal(key, (2, 4, 16, 16), dtype=jnp.float32) * 4.0

    x_round, x_pooled, round_bits = avg_pooling(x, scale=2, levels=4)
    jax.block_until_ready((x_round, x_pooled, round_bits))

    # Pure-JAX reference with the PyTorch module's literal semantics:
    #   x_ = pool(x); xq, bits = round_quantizer(x)   (quantizer on original x)
    pooled_ref = jnp.mean(x.reshape(2, 4, 8, 2, 8, 2), axis=(3, 5))
    xq_ref = jnp.round(x)
    bits_ref = jnp.mod(jnp.round(x * 4.0 + 2.0 - xq_ref * 4.0), 4.0)

    assert x_round.shape == (2, 4, 16, 16)
    assert x_pooled.shape == (2, 4, 8, 8)
    assert round_bits.shape == (2, 4, 16, 16)
    assert jnp.allclose(x_pooled, pooled_ref, atol=1e-5)
    assert jnp.allclose(x_round, xq_ref, atol=1e-6)
    assert jnp.allclose(round_bits, bits_ref, atol=1e-6)

    print("KERNEL_OK")
</pallas_src>

<mosaic_0001>
module attributes {stable_mosaic.version = 11 : i64} {
  func.func @_pool_round_kernel(%arg0: i32, %arg1: memref<8x256xf32, #tpu.memory_space<vmem>>, %arg2: memref<256x64xf32, #tpu.memory_space<vmem>>, %arg3: memref<8x256xf32, #tpu.memory_space<vmem>>, %arg4: memref<8x64xf32, #tpu.memory_space<vmem>>, %arg5: memref<8x256xf32, #tpu.memory_space<vmem>>) attributes {dimension_semantics = [#tpu.dimension_semantics<parallel>], iteration_bounds = array<i64: 1>, scalar_prefetch = 0 : i64, scratch_operands = 0 : i64, tpu.core_type = #tpu.core_type<tc>, window_params = [{transform_indices = @transform_0, window_bounds = array<i64: 8, 256>}, {pipeline_mode = #tpu.pipeline_mode<synchronous>, transform_indices = @transform_1, window_bounds = array<i64: 256, 64>}, {transform_indices = @transform_2, window_bounds = array<i64: 8, 256>}, {transform_indices = @transform_3, window_bounds = array<i64: 8, 64>}, {transform_indices = @transform_4, window_bounds = array<i64: 8, 256>}]} {
    %c0 = arith.constant 0 : index
    %c0_0 = arith.constant 0 : index
    %0 = vector.load %arg1[%c0, %c0_0] : memref<8x256xf32, #tpu.memory_space<vmem>>, vector<8x256xf32>
    %1 = math.roundeven %0 : vector<8x256xf32>
    %cst = arith.constant 4.000000e+00 : f32
    %2 = vector.broadcast %cst : f32 to vector<8x256xf32>
    %3 = arith.mulf %0, %2 : vector<8x256xf32>
    %cst_1 = arith.constant 2.000000e+00 : f32
    %4 = vector.broadcast %cst_1 : f32 to vector<8x256xf32>
    %5 = arith.addf %3, %4 : vector<8x256xf32>
    %cst_2 = arith.constant 4.000000e+00 : f32
    %6 = vector.broadcast %cst_2 : f32 to vector<8x256xf32>
    %7 = arith.mulf %1, %6 : vector<8x256xf32>
    %8 = arith.subf %5, %7 : vector<8x256xf32>
    %9 = math.roundeven %8 : vector<8x256xf32>
    %cst_3 = arith.constant 4.000000e+00 : f32
    %10 = vector.broadcast %cst_3 : f32 to vector<8x256xf32>
    %11 = arith.cmpf oge, %9, %10 : vector<8x256xf32>
    %cst_4 = arith.constant 4.000000e+00 : f32
    %12 = vector.broadcast %cst_4 : f32 to vector<8x256xf32>
    %13 = arith.subf %9, %12 : vector<8x256xf32>
    %14 = arith.select %11, %13, %9 : vector<8x256xi1>, vector<8x256xf32>
    %c0_5 = arith.constant 0 : index
    %c0_6 = arith.constant 0 : index
    %15 = vector.load %arg2[%c0_5, %c0_6] : memref<256x64xf32, #tpu.memory_space<vmem>>, vector<256x64xf32>
    %cst_7 = arith.constant dense<0.000000e+00> : vector<8x64xf32>
    %16 = tpu.matmul %0, %15, %cst_7 {dimension_numbers = #tpu.dot_dimension_numbers<[1], [0], [0], [1], [0, 0, 1, 1], [], []>, precision = #tpu.contract_precision<fp32>} : vector<8x256xf32>, vector<256x64xf32>, vector<8x64xf32> -> vector<8x64xf32>
    %cst_8 = arith.constant 2.500000e-01 : f32
    %17 = vector.broadcast %cst_8 : f32 to vector<8x64xf32>
    %18 = arith.mulf %16, %17 : vector<8x64xf32>
    %c0_9 = arith.constant 0 : index
    %c0_10 = arith.constant 0 : index
    %19 = vector.load %arg3[%c0_9, %c0_10] : memref<8x256xf32, #tpu.memory_space<vmem>>, vector<8x256xf32>
    tpu.vector_store %arg3[%c0_9, %c0_10], %1 {strides = array<i32>} : memref<8x256xf32, #tpu.memory_space<vmem>>, vector<8x256xf32>,
    %c0_11 = arith.constant 0 : index
    %c0_12 = arith.constant 0 : index
    %20 = vector.load %arg4[%c0_11, %c0_12] : memref<8x64xf32, #tpu.memory_space<vmem>>, vector<8x64xf32>
    tpu.vector_store %arg4[%c0_11, %c0_12], %18 {strides = array<i32>} : memref<8x64xf32, #tpu.memory_space<vmem>>, vector<8x64xf32>,
    %c0_13 = arith.constant 0 : index
    %c0_14 = arith.constant 0 : index
    %21 = vector.load %arg5[%c0_13, %c0_14] : memref<8x256xf32, #tpu.memory_space<vmem>>, vector<8x256xf32>
    tpu.vector_store %arg5[%c0_13, %c0_14], %14 {strides = array<i32>} : memref<8x256xf32, #tpu.memory_space<vmem>>, vector<8x256xf32>,
    return
  }
  func.func @transform_0(%arg0: i32) -> (i32, i32) {
    %c0_i32 = arith.constant 0 : i32
    %c0_i32_0 = arith.constant 0 : i32
    return %arg0, %c0_i32 : i32, i32
  }
  func.func @transform_1(%arg0: i32) -> (i32, i32) {
    %c0_i32 = arith.constant 0 : i32
    %c0_i32_0 = arith.constant 0 : i32
    %c0_i32_1 = arith.constant 0 : i32
    return %c0_i32, %c0_i32_0 : i32, i32
  }
  func.func @transform_2(%arg0: i32) -> (i32, i32) {
    %c0_i32 = arith.constant 0 : i32
    %c0_i32_0 = arith.constant 0 : i32
    return %arg0, %c0_i32 : i32, i32
  }
  func.func @transform_3(%arg0: i32) -> (i32, i32) {
    %c0_i32 = arith.constant 0 : i32
    %c0_i32_0 = arith.constant 0 : i32
    return %arg0, %c0_i32 : i32, i32
  }
  func.func @transform_4(%arg0: i32) -> (i32, i32) {
    %c0_i32 = arith.constant 0 : i32
    %c0_i32_0 = arith.constant 0 : i32
    return %arg0, %c0_i32 : i32, i32
  }
}

</mosaic_0001>

<llo_original>
// kernel: tpu_custom_call.1
$region0: #{tpu_custom_call.1}
  #allocation0 [shape = 'u32[]', space=smem, size = 0x4, offset = 0x4, fixed_abs, tag = 'smem constant byte address 0x4 - core index']
  #allocation1 [shape = 'u32[72,128]{1,0:T(1,128)}', space=vmem, size = 0x9000, scoped, tag = 'internal scratch']
  %s0 = inlined_call_operand.vmem [shape: f32[8,256], index: 0, kind: input, shape index: {}]
  %s1 = inlined_call_operand.vmem [shape: f32[256,64], index: 1, kind: input, shape index: {}]
  %s2 = inlined_call_operand.hbm [shape: f32[8,256], index: 2, kind: output, shape index: {0}]
  %s3 = inlined_call_operand.hbm [shape: f32[8,64], index: 3, kind: output, shape index: {1}]
  %s4 = inlined_call_operand.hbm [shape: f32[8,256], index: 4, kind: output, shape index: {2}]
  %5 = xla_tuple %s2, %s3, %s4
  %s6 = sld [smem:[#allocation0]]
  $region34: #{tpu_custom_call.1} parent=0
    _
  %s8 = ssub.s32 1, %s6
  %s9 = scalar_select 0, %s8, %s6
  $region1: #{tpu_custom_call.1} parent=0
    #allocation2 [shape = 'u8[8192]{0}', space=vmem, size = 0x2000, scoped, tag = 'output window, operand 0, single buffered']
    #allocation3 [shape = 's32[1]{0}', space=sflag, size = 0x4, scoped, tag = 'scoped memory for tpu_custom_call.1']
    #allocation4 [shape = 'u8[4096]{0}', space=vmem, size = 0x1000, scoped, tag = 'output window, operand 1, single buffered']
    #allocation5 [shape = 's32[1]{0}', space=sflag, size = 0x4, scoped, tag = 'scoped memory for tpu_custom_call.1']
    #allocation6 [shape = 'u8[8192]{0}', space=vmem, size = 0x2000, scoped, tag = 'output window, operand 2, single buffered']
    %10 = vsyncpa [#allocation3], 0
    %11 = vsyncpa [#allocation5], 0
    // Predicated region
    $region2: #{tpu_custom_call.1} parent=1 // pred_check
      _
    $region3: #{tpu_custom_call.1} parent=1 // pred_check_branch
      %13 = sbr.rel (0) target = $region5
    $region4: #{tpu_custom_call.1} parent=1 // pred_region
      _
    $region5: #{tpu_custom_call.1} parent=1 // pred_fallthru
      _
    // Predicated region
    $region6: #{tpu_custom_call.1} parent=1 // pred_check
      _
    $region7: #{tpu_custom_call.1} parent=1 // pred_check_branch
      %15 = sbr.rel (0) target = $region9
    $region8: #{tpu_custom_call.1} parent=1 // pred_region
      _
    $region9: #{tpu_custom_call.1} parent=1 // pred_fallthru
      _
    %v16 = vld [vmem:[%s0] sm:$0xff]
    %v17 = vld [vmem:[%s0 + $0x8] sm:$0xff]
    %v18 = vround.ne.pseudo %v16
    %v19 = vround.ne.pseudo %v17
    %v20 = vmul.f32 %v16, 4.0
    %v21 = vmul.f32 %v17, 4.0
    %v22 = vadd.f32 %v20, 2.0
    %v23 = vadd.f32 %v21, 2.0
    %v24 = vmul.f32 %v18, 4.0
    %v25 = vmul.f32 %v19, 4.0
    %v26 = vsub.f32 %v22, %v24
    %v27 = vsub.f32 %v23, %v25
    %v28 = vround.ne.pseudo %v26
    %v29 = vround.ne.pseudo %v27
    %vm30 = vcmp.ge.f32.partialorder %v28, 4.0
    %vm31 = vcmp.ge.f32.partialorder %v29, 4.0
    %v32 = vsub.f32 %v28, 4.0
    %v33 = vsub.f32 %v29, 4.0
    %v34 = vsel %vm30, %v32, %v28
    %v35 = vsel %vm31, %v33, %v29
    %v36 = vld [vmem:[%s1] sm:$0xff]
    %v37 = vld [vmem:[%s1 + $0x8] sm:$0xff]
    %v38 = vld [vmem:[%s1 + $0x10] sm:$0xff]
    %v39 = vld [vmem:[%s1 + $0x18] sm:$0xff]
    %v40 = vld [vmem:[%s1 + $0x20] sm:$0xff]
    %v41 = vld [vmem:[%s1 + $0x28] sm:$0xff]
    %v42 = vld [vmem:[%s1 + $0x30] sm:$0xff]
    %v43 = vld [vmem:[%s1 + $0x38] sm:$0xff]
    %v44 = vld [vmem:[%s1 + $0x40] sm:$0xff]
    %v45 = vld [vmem:[%s1 + $0x48] sm:$0xff]
    %v46 = vld [vmem:[%s1 + $0x50] sm:$0xff]
    %v47 = vld [vmem:[%s1 + $0x58] sm:$0xff]
    %v48 = vld [vmem:[%s1 + $0x60] sm:$0xff]
    %v49 = vld [vmem:[%s1 + $0x68] sm:$0xff]
    %v50 = vld [vmem:[%s1 + $0x70] sm:$0xff]
    %v51 = vld [vmem:[%s1 + $0x78] sm:$0xff]
    %v52 = vld [vmem:[%s1 + $0x80] sm:$0xff]
    %v53 = vld [vmem:[%s1 + $0x88] sm:$0xff]
    %v54 = vld [vmem:[%s1 + $0x90] sm:$0xff]
    %v55 = vld [vmem:[%s1 + $0x98] sm:$0xff]
    %v56 = vld [vmem:[%s1 + $0xa0] sm:$0xff]
    %v57 = vld [vmem:[%s1 + $0xa8] sm:$0xff]
    %v58 = vld [vmem:[%s1 + $0xb0] sm:$0xff]
    %v59 = vld [vmem:[%s1 + $0xb8] sm:$0xff]
    %v60 = vld [vmem:[%s1 + $0xc0] sm:$0xff]
    %v61 = vld [vmem:[%s1 + $0xc8] sm:$0xff]
    %v62 = vld [vmem:[%s1 + $0xd0] sm:$0xff]
    %v63 = vld [vmem:[%s1 + $0xd8] sm:$0xff]
    %v64 = vld [vmem:[%s1 + $0xe0] sm:$0xff]
    %v65 = vld [vmem:[%s1 + $0xe8] sm:$0xff]
    %v66 = vld [vmem:[%s1 + $0xf0] sm:$0xff]
    %v67 = vld [vmem:[%s1 + $0xf8] sm:$0xff]
    %v68 = vand.u32 %v51, 4294901760
    %69 = vmatpush.msra.mxu0 %v68
    %v70 = vand.u32 %v50, 4294901760
    %71 = vmatpush.msra.mxu0 %v70
    %v72 = vand.u32 %v49, 4294901760
    %73 = vmatpush.msra.mxu0 %v72
    %v74 = vand.u32 %v48, 4294901760
    %75 = vmatpush.msra.mxu0 %v74
    %v76 = vand.u32 %v47, 4294901760
    %77 = vmatpush.msra.mxu0 %v76
    %v78 = vand.u32 %v46, 4294901760
    %79 = vmatpush.msra.mxu0 %v78
    %v80 = vand.u32 %v45, 4294901760
    %81 = vmatpush.msra.mxu0 %v80
    %v82 = vand.u32 %v44, 4294901760
    %83 = vmatpush.msra.mxu0 %v82
    %v84 = vand.u32 %v43, 4294901760
    %85 = vmatpush.msra.mxu0 %v84
    %v86 = vand.u32 %v42, 4294901760
    %87 = vmatpush.msra.mxu0 %v86
    %v88 = vand.u32 %v41, 4294901760
    %89 = vmatpush.msra.mxu0 %v88
    %v90 = vand.u32 %v40, 4294901760
    %91 = vmatpush.msra.mxu0 %v90
    %v92 = vand.u32 %v39, 4294901760
    %93 = vmatpush.msra.mxu0 %v92
    %v94 = vand.u32 %v38, 4294901760
    %95 = vmatpush.msra.mxu0 %v94
    %v96 = vand.u32 %v37, 4294901760
    %97 = vmatpush.msra.mxu0 %v96
    %v98 = vand.u32 %v36, 4294901760
    %99 = vmatpush.msra.mxu0 %v98
    %v100 = vand.u32 %v16, 4294901760
    %v101 = vsub.f32 %v16, %v100
    %v102 = vand.u32 %v101, 4294901760
    %v103 = vsub.f32 %v101, %v102
    %v104 = vand.u32 %v103, 4294901760
    %105 = vmatmul.f32.gmra.mxu0 %v104
    %v106 = vpop.f32.mrf.mxu0
    %v107 = vadd.f32 0.0, %v106
    %108 = vdwg.mxu0
    %v109 = vand.u32 %v51, 4294901760
    %v110 = vsub.f32 %v51, %v109
    %v111 = vand.u32 %v110, 4294901760
    %v112 = vsub.f32 %v110, %v111
    %v113 = vand.u32 %v112, 4294901760
    %114 = vmatpush.msra.mxu0 %v113
    %v115 = vand.u32 %v50, 4294901760
    %v116 = vsub.f32 %v50, %v115
    %v117 = vand.u32 %v116, 4294901760
    %v118 = vsub.f32 %v116, %v117
    %v119 = vand.u32 %v118, 4294901760
    %120 = vmatpush.msra.mxu0 %v119
    %v121 = vand.u32 %v49, 4294901760
    %v122 = vsub.f32 %v49, %v121
    %v123 = vand.u32 %v122, 4294901760
    %v124 = vsub.f32 %v122, %v123
    %v125 = vand.u32 %v124, 4294901760
    %126 = vmatpush.msra.mxu0 %v125
    %v127 = vand.u32 %v48, 4294901760
    %v128 = vsub.f32 %v48, %v127
    %v129 = vand.u32 %v128, 4294901760
    %v130 = vsub.f32 %v128, %v129
    %v131 = vand.u32 %v130, 4294901760
    %132 = vmatpush.msra.mxu0 %v131
    %v133 = vand.u32 %v47, 4294901760
    %v134 = vsub.f32 %v47, %v133
    %v135 = vand.u32 %v134, 4294901760
    %v136 = vsub.f32 %v134, %v135
    %v137 = vand.u32 %v136, 4294901760
    %138 = vmatpush.msra.mxu0 %v137
    %v139 = vand.u32 %v46, 4294901760
    %v140 = vsub.f32 %v46, %v139
    %v141 = vand.u32 %v140, 4294901760
    %v142 = vsub.f32 %v140, %v141
    %v143 = vand.u32 %v142, 4294901760
    %144 = vmatpush.msra.mxu0 %v143
    %v145 = vand.u32 %v45, 4294901760
    %v146 = vsub.f32 %v45, %v145
    %v147 = vand.u32 %v146, 4294901760
    %v148 = vsub.f32 %v146, %v147
    %v149 = vand.u32 %v148, 4294901760
    %150 = vmatpush.msra.mxu0 %v149
    %v151 = vand.u32 %v44, 4294901760
    %v152 = vsub.f32 %v44, %v151
    %v153 = vand.u32 %v152, 4294901760
    %v154 = vsub.f32 %v152, %v153
    %v155 = vand.u32 %v154, 4294901760
    %156 = vmatpush.msra.mxu0 %v155
    %v157 = vand.u32 %v43, 4294901760
    %v158 = vsub.f32 %v43, %v157
    %v159 = vand.u32 %v158, 4294901760
    %v160 = vsub.f32 %v158, %v159
    %v161 = vand.u32 %v160, 4294901760
    %162 = vmatpush.msra.mxu0 %v161
    %v163 = vand.u32 %v42, 4294901760
    %v164 = vsub.f32 %v42, %v163
    %v165 = vand.u32 %v164, 4294901760
    %v166 = vsub.f32 %v164, %v165
    %v167 = vand.u32 %v166, 4294901760
    %168 = vmatpush.msra.mxu0 %v167
    %v169 = vand.u32 %v41, 4294901760
    %v170 = vsub.f32 %v41, %v169
    %v171 = vand.u32 %v170, 4294901760
    %v172 = vsub.f32 %v170, %v171
    %v173 = vand.u32 %v172, 4294901760
    %174 = vmatpush.msra.mxu0 %v173
    %v175 = vand.u32 %v40, 4294901760
    %v176 = vsub.f32 %v40, %v175
    %v177 = vand.u32 %v176, 4294901760
    %v178 = vsub.f32 %v176, %v177
    %v179 = vand.u32 %v178, 4294901760
    %180 = vmatpush.msra.mxu0 %v179
    %v181 = vand.u32 %v39, 4294901760
    %v182 = vsub.f32 %v39, %v181
    %v183 = vand.u32 %v182, 4294901760
    %v184 = vsub.f32 %v182, %v183
    %v185 = vand.u32 %v184, 4294901760
    %186 = vmatpush.msra.mxu0 %v185
    %v187 = vand.u32 %v38, 4294901760
    %v188 = vsub.f32 %v38, %v187
    %v189 = vand.u32 %v188, 4294901760
    %v190 = vsub.f32 %v188, %v189
    %v191 = vand.u32 %v190, 4294901760
    %192 = vmatpush.msra.mxu0 %v191
    %v193 = vand.u32 %v37, 4294901760
    %v194 = vsub.f32 %v37, %v193
    %v195 = vand.u32 %v194, 4294901760
    %v196 = vsub.f32 %v194, %v195
    %v197 = vand.u32 %v196, 4294901760
    %198 = vmatpush.msra.mxu0 %v197
    %v199 = vand.u32 %v36, 4294901760
    %v200 = vsub.f32 %v36, %v199
    %v201 = vand.u32 %v200, 4294901760
    %v202 = vsub.f32 %v200, %v201
    %v203 = vand.u32 %v202, 4294901760
    %204 = vmatpush.msra.mxu0 %v203
    %v205 = vand.u32 %v16, 4294901760
    %206 = vmatmul.f32.gmra.mxu0 %v205
    %v207 = vpop.f32.mrf.mxu0
    %v208 = vadd.f32 %v107, %v207
    %209 = vdwg.mxu0
    %v210 = vand.u32 %v51, 4294901760
    %v211 = vsub.f32 %v51, %v210
    %212 = vmatpush.msra.mxu0 %v211
    %v213 = vand.u32 %v50, 4294901760
    %v214 = vsub.f32 %v50, %v213
    %215 = vmatpush.msra.mxu0 %v214
    %v216 = vand.u32 %v49, 4294901760
    %v217 = vsub.f32 %v49, %v216
    %218 = vmatpush.msra.mxu0 %v217
    %v219 = vand.u32 %v48, 4294901760
    %v220 = vsub.f32 %v48, %v219
    %221 = vmatpush.msra.mxu0 %v220
    %v222 = vand.u32 %v47, 4294901760
    %v223 = vsub.f32 %v47, %v222
    %224 = vmatpush.msra.mxu0 %v223
    %v225 = vand.u32 %v46, 4294901760
    %v226 = vsub.f32 %v46, %v225
    %227 = vmatpush.msra.mxu0 %v226
    %v228 = vand.u32 %v45, 4294901760
    %v229 = vsub.f32 %v45, %v228
    %230 = vmatpush.msra.mxu0 %v229
    %v231 = vand.u32 %v44, 4294901760
    %v232 = vsub.f32 %v44, %v231
    %233 = vmatpush.msra.mxu0 %v232
    %v234 = vand.u32 %v43, 4294901760
    %v235 = vsub.f32 %v43, %v234
    %236 = vmatpush.msra.mxu0 %v235
    %v237 = vand.u32 %v42, 4294901760
    %v238 = vsub.f32 %v42, %v237
    %239 = vmatpush.msra.mxu0 %v238
    %v240 = vand.u32 %v41, 4294901760
    %v241 = vsub.f32 %v41, %v240
    %242 = vmatpush.msra.mxu0 %v241
    %v243 = vand.u32 %v40, 4294901760
    %v244 = vsub.f32 %v40, %v243
    %245 = vmatpush.msra.mxu0 %v244
    %v246 = vand.u32 %v39, 4294901760
    %v247 = vsub.f32 %v39, %v246
    %248 = vmatpush.msra.mxu0 %v247
    %v249 = vand.u32 %v38, 4294901760
    %v250 = vsub.f32 %v38, %v249
    %251 = vmatpush.msra.mxu0 %v250
    %v252 = vand.u32 %v37, 4294901760
    %v253 = vsub.f32 %v37, %v252
    %254 = vmatpush.msra.mxu0 %v253
    %v255 = vand.u32 %v36, 4294901760
    %v256 = vsub.f32 %v36, %v255
    %257 = vmatpush.msra.mxu0 %v256
    %v258 = vand.u32 %v16, 4294901760
    %v259 = vsub.f32 %v16, %v258
    %260 = vmatmul.f32.gmra.mxu0 %v259
    %v261 = vpop.f32.mrf.mxu0
    %v262 = vadd.f32 %v208, %v261
    %263 = vdwg.mxu0
    %v264 = vand.u32 %v51, 4294901760
    %265 = vmatpush.msra.mxu0 %v264
    %v266 = vand.u32 %v50, 4294901760
    %267 = vmatpush.msra.mxu0 %v266
    %v268 = vand.u32 %v49, 4294901760
    %269 = vmatpush.msra.mxu0 %v268
    %v270 = vand.u32 %v48, 4294901760
    %271 = vmatpush.msra.mxu0 %v270
    %v272 = vand.u32 %v47, 4294901760
    %273 = vmatpush.msra.mxu0 %v272
    %v274 = vand.u32 %v46, 4294901760
    %275 = vmatpush.msra.mxu0 %v274
    %v276 = vand.u32 %v45, 4294901760
    %277 = vmatpush.msra.mxu0 %v276
    %v278 = vand.u32 %v44, 4294901760
    %279 = vmatpush.msra.mxu0 %v278
    %v280 = vand.u32 %v43, 4294901760
    %281 = vmatpush.msra.mxu0 %v280
    %v282 = vand.u32 %v42, 4294901760
    %283 = vmatpush.msra.mxu0 %v282
    %v284 = vand.u32 %v41, 4294901760
    %285 = vmatpush.msra.mxu0 %v284
    %v286 = vand.u32 %v40, 4294901760
    %287 = vmatpush.msra.mxu0 %v286
    %v288 = vand.u32 %v39, 4294901760
    %289 = vmatpush.msra.mxu0 %v288
    %v290 = vand.u32 %v38, 4294901760
    %291 = vmatpush.msra.mxu0 %v290
    %v292 = vand.u32 %v37, 4294901760
    %293 = vmatpush.msra.mxu0 %v292
    %v294 = vand.u32 %v36, 4294901760
    %295 = vmatpush.msra.mxu0 %v294
    %v296 = vand.u32 %v16, 4294901760
    %v297 = vsub.f32 %v16, %v296
    %v298 = vand.u32 %v297, 4294901760
    %299 = vmatmul.f32.gmra.mxu0 %v298
    %v300 = vpop.f32.mrf.mxu0
    %v301 = vadd.f32 %v262, %v300
    %302 = vdwg.mxu0
    %v303 = vand.u32 %v51, 4294901760
    %v304 = vsub.f32 %v51, %v303
    %v305 = vand.u32 %v304, 4294901760
    %306 = vmatpush.msra.mxu0 %v305
    %v307 = vand.u32 %v50, 4294901760
    %v308 = vsub.f32 %v50, %v307
    %v309 = vand.u32 %v308, 4294901760
    %310 = vmatpush.msra.mxu0 %v309
    %v311 = vand.u32 %v49, 4294901760
    %v312 = vsub.f32 %v49, %v311
    %v313 = vand.u32 %v312, 4294901760
    %314 = vmatpush.msra.mxu0 %v313
    %v315 = vand.u32 %v48, 4294901760
    %v316 = vsub.f32 %v48, %v315
    %v317 = vand.u32 %v316, 4294901760
    %318 = vmatpush.msra.mxu0 %v317
    %v319 = vand.u32 %v47, 4294901760
    %v320 = vsub.f32 %v47, %v319
    %v321 = vand.u32 %v320, 4294901760
    %322 = vmatpush.msra.mxu0 %v321
    %v323 = vand.u32 %v46, 4294901760
    %v324 = vsub.f32 %v46, %v323
    %v325 = vand.u32 %v324, 4294901760
    %326 = vmatpush.msra.mxu0 %v325
    %v327 = vand.u32 %v45, 4294901760
    %v328 = vsub.f32 %v45, %v327
    %v329 = vand.u32 %v328, 4294901760
    %330 = vmatpush.msra.mxu0 %v329
    %v331 = vand.u32 %v44, 4294901760
    %v332 = vsub.f32 %v44, %v331
    %v333 = vand.u32 %v332, 4294901760
    %334 = vmatpush.msra.mxu0 %v333
    %v335 = vand.u32 %v43, 4294901760
    %v336 = vsub.f32 %v43, %v335
    %v337 = vand.u32 %v336, 4294901760
    %338 = vmatpush.msra.mxu0 %v337
    %v339 = vand.u32 %v42, 4294901760
    %v340 = vsub.f32 %v42, %v339
    %v341 = vand.u32 %v340, 4294901760
    %342 = vmatpush.msra.mxu0 %v341
    %v343 = vand.u32 %v41, 4294901760
    %v344 = vsub.f32 %v41, %v343
    %v345 = vand.u32 %v344, 4294901760
    %346 = vmatpush.msra.mxu0 %v345
    %v347 = vand.u32 %v40, 4294901760
    %v348 = vsub.f32 %v40, %v347
    %v349 = vand.u32 %v348, 4294901760
    %350 = vmatpush.msra.mxu0 %v349
    %v351 = vand.u32 %v39, 4294901760
    %v352 = vsub.f32 %v39, %v351
    %v353 = vand.u32 %v352, 4294901760
    %354 = vmatpush.msra.mxu0 %v353
    %v355 = vand.u32 %v38, 4294901760
    %v356 = vsub.f32 %v38, %v355
    %v357 = vand.u32 %v356, 4294901760
    %358 = vmatpush.msra.mxu0 %v357
    %v359 = vand.u32 %v37, 4294901760
    %v360 = vsub.f32 %v37, %v359
    %v361 = vand.u32 %v360, 4294901760
    %362 = vmatpush.msra.mxu0 %v361
    %v363 = vand.u32 %v36, 4294901760
    %v364 = vsub.f32 %v36, %v363
    %v365 = vand.u32 %v364, 4294901760
    %366 = vmatpush.msra.mxu0 %v365
    %v367 = vand.u32 %v16, 4294901760
    %368 = vmatmul.f32.gmra.mxu0 %v367
    %v369 = vpop.f32.mrf.mxu0
    %v370 = vadd.f32 %v301, %v369
    %371 = vdwg.mxu0
    %v372 = vand.u32 %v51, 4294901760
    %373 = vmatpush.msra.mxu0 %v372
    %v374 = vand.u32 %v50, 4294901760
    %375 = vmatpush.msra.mxu0 %v374
    %v376 = vand.u32 %v49, 4294901760
    %377 = vmatpush.msra.mxu0 %v376
    %v378 = vand.u32 %v48, 4294901760
    %379 = vmatpush.msra.mxu0 %v378
    %v380 = vand.u32 %v47, 4294901760
    %381 = vmatpush.msra.mxu0 %v380
    %v382 = vand.u32 %v46, 4294901760
    %383 = vmatpush.msra.mxu0 %v382
    %v384 = vand.u32 %v45, 4294901760
    %385 = vmatpush.msra.mxu0 %v384
    %v386 = vand.u32 %v44, 4294901760
    %387 = vmatpush.msra.mxu0 %v386
    %v388 = vand.u32 %v43, 4294901760
    %389 = vmatpush.msra.mxu0 %v388
    %v390 = vand.u32 %v42, 4294901760
    %391 = vmatpush.msra.mxu0 %v390
    %v392 = vand.u32 %v41, 4294901760
    %393 = vmatpush.msra.mxu0 %v392
    %v394 = vand.u32 %v40, 4294901760
    %395 = vmatpush.msra.mxu0 %v394
    %v396 = vand.u32 %v39, 4294901760
    %397 = vmatpush.msra.mxu0 %v396
    %v398 = vand.u32 %v38, 4294901760
    %399 = vmatpush.msra.mxu0 %v398
    %v400 = vand.u32 %v37, 4294901760
    %401 = vmatpush.msra.mxu0 %v400
    %v402 = vand.u32 %v36, 4294901760
    %403 = vmatpush.msra.mxu0 %v402
    %v404 = vand.u32 %v16, 4294901760
    %405 = vmatmul.f32.gmra.mxu0 %v404
    %v406 = vpop.f32.mrf.mxu0
    %v407 = vadd.f32 %v370, %v406
    %408 = vdwg.mxu0
    %v409 = vand.u32 %v67, 4294901760
    %410 = vmatpush.msra.mxu0 %v409
    %v411 = vand.u32 %v66, 4294901760
    %412 = vmatpush.msra.mxu0 %v411
    %v413 = vand.u32 %v65, 4294901760
    %414 = vmatpush.msra.mxu0 %v413
    %v415 = vand.u32 %v64, 4294901760
    %416 = vmatpush.msra.mxu0 %v415
    %v417 = vand.u32 %v63, 4294901760
    %418 = vmatpush.msra.mxu0 %v417
    %v419 = vand.u32 %v62, 4294901760
    %420 = vmatpush.msra.mxu0 %v419
    %v421 = vand.u32 %v61, 4294901760
    %422 = vmatpush.msra.mxu0 %v421
    %v423 = vand.u32 %v60, 4294901760
    %424 = vmatpush.msra.mxu0 %v423
    %v425 = vand.u32 %v59, 4294901760
    %426 = vmatpush.msra.mxu0 %v425
    %v427 = vand.u32 %v58, 4294901760
    %428 = vmatpush.msra.mxu0 %v427
    %v429 = vand.u32 %v57, 4294901760
    %430 = vmatpush.msra.mxu0 %v429
    %v431 = vand.u32 %v56, 4294901760
    %432 = vmatpush.msra.mxu0 %v431
    %v433 = vand.u32 %v55, 4294901760
    %434 = vmatpush.msra.mxu0 %v433
    %v435 = vand.u32 %v54, 4294901760
    %436 = vmatpush.msra.mxu0 %v435
    %v437 = vand.u32 %v53, 4294901760
    %438 = vmatpush.msra.mxu0 %v437
    %v439 = vand.u32 %v52, 4294901760
    %440 = vmatpush.msra.mxu0 %v439
    %v441 = vand.u32 %v17, 4294901760
    %v442 = vsub.f32 %v17, %v441
    %v443 = vand.u32 %v442, 4294901760
    %v444 = vsub.f32 %v442, %v443
    %v445 = vand.u32 %v444, 4294901760
    %446 = vmatmul.f32.gmra.mxu0 %v445
    %v447 = vpop.f32.mrf.mxu0
    %v448 = vadd.f32 %v407, %v447
    %449 = vdwg.mxu0
    %v450 = vand.u32 %v67, 4294901760
    %v451 = vsub.f32 %v67, %v450
    %v452 = vand.u32 %v451, 4294901760
    %v453 = vsub.f32 %v451, %v452
    %v454 = vand.u32 %v453, 4294901760
    %455 = vmatpush.msra.mxu0 %v454
    %v456 = vand.u32 %v66, 4294901760
    %v457 = vsub.f32 %v66, %v456
    %v458 = vand.u32 %v457, 4294901760
    %v459 = vsub.f32 %v457, %v458
    %v460 = vand.u32 %v459, 4294901760
    %461 = vmatpush.msra.mxu0 %v460
    %v462 = vand.u32 %v65, 4294901760
    %v463 = vsub.f32 %v65, %v462
    %v464 = vand.u32 %v463, 4294901760
    %v465 = vsub.f32 %v463, %v464
    %v466 = vand.u32 %v465, 4294901760
    %467 = vmatpush.msra.mxu0 %v466
    %v468 = vand.u32 %v64, 4294901760
    %v469 = vsub.f32 %v64, %v468
    %v470 = vand.u32 %v469, 4294901760
    %v471 = vsub.f32 %v469, %v470
    %v472 = vand.u32 %v471, 4294901760
    %473 = vmatpush.msra.mxu0 %v472
    %v474 = vand.u32 %v63, 4294901760
    %v475 = vsub.f32 %v63, %v474
    %v476 = vand.u32 %v475, 4294901760
    %v477 = vsub.f32 %v475, %v476
    %v478 = vand.u32 %v477, 4294901760
    %479 = vmatpush.msra.mxu0 %v478
    %v480 = vand.u32 %v62, 4294901760
    %v481 = vsub.f32 %v62, %v480
    %v482 = vand.u32 %v481, 4294901760
    %v483 = vsub.f32 %v481, %v482
    %v484 = vand.u32 %v483, 4294901760
    %485 = vmatpush.msra.mxu0 %v484
    %v486 = vand.u32 %v61, 4294901760
    %v487 = vsub.f32 %v61, %v486
    %v488 = vand.u32 %v487, 4294901760
    %v489 = vsub.f32 %v487, %v488
    %v490 = vand.u32 %v489, 4294901760
    %491 = vmatpush.msra.mxu0 %v490
    %v492 = vand.u32 %v60, 4294901760
    %v493 = vsub.f32 %v60, %v492
    %v494 = vand.u32 %v493, 4294901760
    %v495 = vsub.f32 %v493, %v494
    %v496 = vand.u32 %v495, 4294901760
    %497 = vmatpush.msra.mxu0 %v496
    %v498 = vand.u32 %v59, 4294901760
    %v499 = vsub.f32 %v59, %v498
    %v500 = vand.u32 %v499, 4294901760
    %v501 = vsub.f32 %v499, %v500
    %v502 = vand.u32 %v501, 4294901760
    %503 = vmatpush.msra.mxu0 %v502
    %v504 = vand.u32 %v58, 4294901760
    %v505 = vsub.f32 %v58, %v504
    %v506 = vand.u32 %v505, 4294901760
    %v507 = vsub.f32 %v505, %v506
    %v508 = vand.u32 %v507, 4294901760
    %509 = vmatpush.msra.mxu0 %v508
    %v510 = vand.u32 %v57, 4294901760
    %v511 = vsub.f32 %v57, %v510
    %v512 = vand.u32 %v511, 4294901760
    %v513 = vsub.f32 %v511, %v512
    %v514 = vand.u32 %v513, 4294901760
    %515 = vmatpush.msra.mxu0 %v514
    %v516 = vand.u32 %v56, 4294901760
    %v517 = vsub.f32 %v56, %v516
    %v518 = vand.u32 %v517, 4294901760
    %v519 = vsub.f32 %v517, %v518
    %v520 = vand.u32 %v519, 4294901760
    %521 = vmatpush.msra.mxu0 %v520
    %v522 = vand.u32 %v55, 4294901760
    %v523 = vsub.f32 %v55, %v522
    %v524 = vand.u32 %v523, 4294901760
    %v525 = vsub.f32 %v523, %v524
    %v526 = vand.u32 %v525, 4294901760
    %527 = vmatpush.msra.mxu0 %v526
    %v528 = vand.u32 %v54, 4294901760
    %v529 = vsub.f32 %v54, %v528
    %v530 = vand.u32 %v529, 4294901760
    %v531 = vsub.f32 %v529, %v530
    %v532 = vand.u32 %v531, 4294901760
    %533 = vmatpush.msra.mxu0 %v532
    %v534 = vand.u32 %v53, 4294901760
    %v535 = vsub.f32 %v53, %v534
    %v536 = vand.u32 %v535, 4294901760
    %v537 = vsub.f32 %v535, %v536
    %v538 = vand.u32 %v537, 4294901760
    %539 = vmatpush.msra.mxu0 %v538
    %v540 = vand.u32 %v52, 4294901760
    %v541 = vsub.f32 %v52, %v540
    %v542 = vand.u32 %v541, 4294901760
    %v543 = vsub.f32 %v541, %v542
    %v544 = vand.u32 %v543, 4294901760
    %545 = vmatpush.msra.mxu0 %v544
    %v546 = vand.u32 %v17, 4294901760
    %547 = vmatmul.f32.gmra.mxu0 %v546
    %v548 = vpop.f32.mrf.mxu0
    %v549 = vadd.f32 %v448, %v548
    %550 = vdwg.mxu0
    %v551 = vand.u32 %v67, 4294901760
    %v552 = vsub.f32 %v67, %v551
    %553 = vmatpush.msra.mxu0 %v552
    %v554 = vand.u32 %v66, 4294901760
    %v555 = vsub.f32 %v66, %v554
    %556 = vmatpush.msra.mxu0 %v555
    %v557 = vand.u32 %v65, 4294901760
    %v558 = vsub.f32 %v65, %v557
    %559 = vmatpush.msra.mxu0 %v558
    %v560 = vand.u32 %v64, 4294901760
    %v561 = vsub.f32 %v64, %v560
    %562 = vmatpush.msra.mxu0 %v561
    %v563 = vand.u32 %v63, 4294901760
    %v564 = vsub.f32 %v63, %v563
    %565 = vmatpush.msra.mxu0 %v564
    %v566 = vand.u32 %v62, 4294901760
    %v567 = vsub.f32 %v62, %v566
    %568 = vmatpush.msra.mxu0 %v567
    %v569 = vand.u32 %v61, 4294901760
    %v570 = vsub.f32 %v61, %v569
    %571 = vmatpush.msra.mxu0 %v570
    %v572 = vand.u32 %v60, 4294901760
    %v573 = vsub.f32 %v60, %v572
    %574 = vmatpush.msra.mxu0 %v573
    %v575 = vand.u32 %v59, 4294901760
    %v576 = vsub.f32 %v59, %v575
    %577 = vmatpush.msra.mxu0 %v576
    %v578 = vand.u32 %v58, 4294901760
    %v579 = vsub.f32 %v58, %v578
    %580 = vmatpush.msra.mxu0 %v579
    %v581 = vand.u32 %v57, 4294901760
    %v582 = vsub.f32 %v57, %v581
    %583 = vmatpush.msra.mxu0 %v582
    %v584 = vand.u32 %v56, 4294901760
    %v585 = vsub.f32 %v56, %v584
    %586 = vmatpush.msra.mxu0 %v585
    %v587 = vand.u32 %v55, 4294901760
    %v588 = vsub.f32 %v55, %v587
    %589 = vmatpush.msra.mxu0 %v588
    %v590 = vand.u32 %v54, 4294901760
    %v591 = vsub.f32 %v54, %v590
    %592 = vmatpush.msra.mxu0 %v591
    %v593 = vand.u32 %v53, 4294901760
    %v594 = vsub.f32 %v53, %v593
    %595 = vmatpush.msra.mxu0 %v594
    %v596 = vand.u32 %v52, 4294901760
    %v597 = vsub.f32 %v52, %v596
    %598 = vmatpush.msra.mxu0 %v597
    %v599 = vand.u32 %v17, 4294901760
    %v600 = vsub.f32 %v17, %v599
    %601 = vmatmul.f32.gmra.mxu0 %v600
    %v602 = vpop.f32.mrf.mxu0
    %v603 = vadd.f32 %v549, %v602
    %604 = vdwg.mxu0
    %v605 = vand.u32 %v67, 4294901760
    %606 = vmatpush.msra.mxu0 %v605
    %v607 = vand.u32 %v66, 4294901760
    %608 = vmatpush.msra.mxu0 %v607
    %v609 = vand.u32 %v65, 4294901760
    %610 = vmatpush.msra.mxu0 %v609
    %v611 = vand.u32 %v64, 4294901760
    %612 = vmatpush.msra.mxu0 %v611
    %v613 = vand.u32 %v63, 4294901760
    %614 = vmatpush.msra.mxu0 %v613
    %v615 = vand.u32 %v62, 4294901760
    %616 = vmatpush.msra.mxu0 %v615
    %v617 = vand.u32 %v61, 4294901760
    %618 = vmatpush.msra.mxu0 %v617
    %v619 = vand.u32 %v60, 4294901760
    %620 = vmatpush.msra.mxu0 %v619
    %v621 = vand.u32 %v59, 4294901760
    %622 = vmatpush.msra.mxu0 %v621
    %v623 = vand.u32 %v58, 4294901760
    %624 = vmatpush.msra.mxu0 %v623
    %v625 = vand.u32 %v57, 4294901760
    %626 = vmatpush.msra.mxu0 %v625
    %v627 = vand.u32 %v56, 4294901760
    %628 = vmatpush.msra.mxu0 %v627
    %v629 = vand.u32 %v55, 4294901760
    %630 = vmatpush.msra.mxu0 %v629
    %v631 = vand.u32 %v54, 4294901760
    %632 = vmatpush.msra.mxu0 %v631
    %v633 = vand.u32 %v53, 4294901760
    %634 = vmatpush.msra.mxu0 %v633
    %v635 = vand.u32 %v52, 4294901760
    %636 = vmatpush.msra.mxu0 %v635
    %v637 = vand.u32 %v17, 4294901760
    %v638 = vsub.f32 %v17, %v637
    %v639 = vand.u32 %v638, 4294901760
    %640 = vmatmul.f32.gmra.mxu0 %v639
    %v641 = vpop.f32.mrf.mxu0
    %v642 = vadd.f32 %v603, %v641
    %643 = vdwg.mxu0
    %v644 = vand.u32 %v67, 4294901760
    %v645 = vsub.f32 %v67, %v644
    %v646 = vand.u32 %v645, 4294901760
    %647 = vmatpush.msra.mxu0 %v646
    %v648 = vand.u32 %v66, 4294901760
    %v649 = vsub.f32 %v66, %v648
    %v650 = vand.u32 %v649, 4294901760
    %651 = vmatpush.msra.mxu0 %v650
    %v652 = vand.u32 %v65, 4294901760
    %v653 = vsub.f32 %v65, %v652
    %v654 = vand.u32 %v653, 4294901760
    %655 = vmatpush.msra.mxu0 %v654
    %v656 = vand.u32 %v64, 4294901760
    %v657 = vsub.f32 %v64, %v656
    %v658 = vand.u32 %v657, 4294901760
    %659 = vmatpush.msra.mxu0 %v658
    %v660 = vand.u32 %v63, 4294901760
    %v661 = vsub.f32 %v63, %v660
    %v662 = vand.u32 %v661, 4294901760
    %663 = vmatpush.msra.mxu0 %v662
    %v664 = vand.u32 %v62, 4294901760
    %v665 = vsub.f32 %v62, %v664
    %v666 = vand.u32 %v665, 4294901760
    %667 = vmatpush.msra.mxu0 %v666
    %v668 = vand.u32 %v61, 4294901760
    %v669 = vsub.f32 %v61, %v668
    %v670 = vand.u32 %v669, 4294901760
    %671 = vmatpush.msra.mxu0 %v670
    %v672 = vand.u32 %v60, 4294901760
    %v673 = vsub.f32 %v60, %v672
    %v674 = vand.u32 %v673, 4294901760
    %675 = vmatpush.msra.mxu0 %v674
    %v676 = vand.u32 %v59, 4294901760
    %v677 = vsub.f32 %v59, %v676
    %v678 = vand.u32 %v677, 4294901760
    %679 = vmatpush.msra.mxu0 %v678
    %v680 = vand.u32 %v58, 4294901760
    %v681 = vsub.f32 %v58, %v680
    %v682 = vand.u32 %v681, 4294901760
    %683 = vmatpush.msra.mxu0 %v682
    %v684 = vand.u32 %v57, 4294901760
    %v685 = vsub.f32 %v57, %v684
    %v686 = vand.u32 %v685, 4294901760
    %687 = vmatpush.msra.mxu0 %v686
    %v688 = vand.u32 %v56, 4294901760
    %v689 = vsub.f32 %v56, %v688
    %v690 = vand.u32 %v689, 4294901760
    %691 = vmatpush.msra.mxu0 %v690
    %v692 = vand.u32 %v55, 4294901760
    %v693 = vsub.f32 %v55, %v692
    %v694 = vand.u32 %v693, 4294901760
    %695 = vmatpush.msra.mxu0 %v694
    %v696 = vand.u32 %v54, 4294901760
    %v697 = vsub.f32 %v54, %v696
    %v698 = vand.u32 %v697, 4294901760
    %699 = vmatpush.msra.mxu0 %v698
    %v700 = vand.u32 %v53, 4294901760
    %v701 = vsub.f32 %v53, %v700
    %v702 = vand.u32 %v701, 4294901760
    %703 = vmatpush.msra.mxu0 %v702
    %v704 = vand.u32 %v52, 4294901760
    %v705 = vsub.f32 %v52, %v704
    %v706 = vand.u32 %v705, 4294901760
    %707 = vmatpush.msra.mxu0 %v706
    %v708 = vand.u32 %v17, 4294901760
    %709 = vmatmul.f32.gmra.mxu0 %v708
    %v710 = vpop.f32.mrf.mxu0
    %v711 = vadd.f32 %v642, %v710
    %712 = vdwg.mxu0
    %v713 = vand.u32 %v67, 4294901760
    %714 = vmatpush.msra.mxu0 %v713
    %v715 = vand.u32 %v66, 4294901760
    %716 = vmatpush.msra.mxu0 %v715
    %v717 = vand.u32 %v65, 4294901760
    %718 = vmatpush.msra.mxu0 %v717
    %v719 = vand.u32 %v64, 4294901760
    %720 = vmatpush.msra.mxu0 %v719
    %v721 = vand.u32 %v63, 4294901760
    %722 = vmatpush.msra.mxu0 %v721
    %v723 = vand.u32 %v62, 4294901760
    %724 = vmatpush.msra.mxu0 %v723
    %v725 = vand.u32 %v61, 4294901760
    %726 = vmatpush.msra.mxu0 %v725
    %v727 = vand.u32 %v60, 4294901760
    %728 = vmatpush.msra.mxu0 %v727
    %v729 = vand.u32 %v59, 4294901760
    %730 = vmatpush.msra.mxu0 %v729
    %v731 = vand.u32 %v58, 4294901760
    %732 = vmatpush.msra.mxu0 %v731
    %v733 = vand.u32 %v57, 4294901760
    %734 = vmatpush.msra.mxu0 %v733
    %v735 = vand.u32 %v56, 4294901760
    %736 = vmatpush.msra.mxu0 %v735
    %v737 = vand.u32 %v55, 4294901760
    %738 = vmatpush.msra.mxu0 %v737
    %v739 = vand.u32 %v54, 4294901760
    %740 = vmatpush.msra.mxu0 %v739
    %v741 = vand.u32 %v53, 4294901760
    %742 = vmatpush.msra.mxu0 %v741
    %v743 = vand.u32 %v52, 4294901760
    %744 = vmatpush.msra.mxu0 %v743
    %v745 = vand.u32 %v17, 4294901760
    %746 = vmatmul.f32.gmra.mxu0 %v745
    %v747 = vpop.f32.mrf.mxu0
    %v748 = vadd.f32 %v711, %v747
    %749 = vdwg.mxu0
    %v750 = vmul.f32 %v748, 0.25
    %751 = vst [vmem:[#allocation2] sm:$0xff] %v18
    %752 = vst [vmem:[#allocation2 + $0x8] sm:$0xff] %v19
    %vm753 = vcmask 523264
    %754 = vst.msk [vmem:[#allocation4] sm:$0xff] %vm753, %v750
    %755 = vst [vmem:[#allocation6] sm:$0xff] %v34
    %756 = vst [vmem:[#allocation6 + $0x8] sm:$0xff] %v35
    // Predicated region
    $region10: #{tpu_custom_call.1} parent=1 // pred_check
      _
    $region11: #{tpu_custom_call.1} parent=1 // pred_check_branch
      %758 = sbr.rel (0) target = $region13
    $region12: #{tpu_custom_call.1} parent=1 // pred_region
      %760 = vsyncadd [#allocation3], 0
      %s762 = sshll.u32 [#allocation2], 4
      %s763 = int_to_ptr.vmem [resolvable:$true] %s762
      %s764 = sshll.u32 %s2, 4
      %s765 = int_to_ptr.hbm [resolvable:$true] %s764
      %767 = dma.vmem_to_hbm [thread:$0]  %s763, 256, %s765, [#allocation3]
    $region13: #{tpu_custom_call.1} parent=1 // pred_fallthru
      _
    // Predicated region
    $region14: #{tpu_custom_call.1} parent=1 // pred_check
      _
    $region15: #{tpu_custom_call.1} parent=1 // pred_check_branch
      %769 = sbr.rel (0) target = $region17
    $region16: #{tpu_custom_call.1} parent=1 // pred_region
      %771 = vsyncadd [#allocation5], 0
      %s773 = sshll.u32 [#allocation4], 4
      %s774 = int_to_ptr.vmem [resolvable:$true] %s773
      %s775 = sshll.u32 %s3, 4
      %s776 = int_to_ptr.hbm [resolvable:$true] %s775
      %778 = dma.vmem_to_hbm [thread:$0]  %s774, 128, %s776, [#allocation5]
    $region17: #{tpu_custom_call.1} parent=1 // pred_fallthru
      _
    // Predicated region
    $region18: #{tpu_custom_call.1} parent=1 // pred_check
      _
    $region19: #{tpu_custom_call.1} parent=1 // pred_check_branch
      %780 = sbr.rel (0) target = $region21
    $region20: #{tpu_custom_call.1} parent=1 // pred_region
      %782 = vsyncadd [#allocation5], 0
      %s784 = sshll.u32 [#allocation6], 4
      %s785 = int_to_ptr.vmem [resolvable:$true] %s784
      %s786 = sshll.u32 %s4, 4
      %s787 = int_to_ptr.hbm [resolvable:$true] %s786
      %789 = dma.vmem_to_hbm [thread:$0]  %s785, 256, %s787, [#allocation5]
    $region21: #{tpu_custom_call.1} parent=1 // pred_fallthru
      _
    // Predicated region
    $region22: #{tpu_custom_call.1} parent=1 // pred_check
      _
    $region23: #{tpu_custom_call.1} parent=1 // pred_check_branch
      %791 = sbr.rel (0) target = $region25
    $region24: #{tpu_custom_call.1} parent=1 // pred_region
      %793 = dma.done [#allocation3], 256
    $region25: #{tpu_custom_call.1} parent=1 // pred_fallthru
      _
    // Predicated region
    $region26: #{tpu_custom_call.1} parent=1 // pred_check
      _
    $region27: #{tpu_custom_call.1} parent=1 // pred_check_branch
      %795 = sbr.rel (0) target = $region29
    $region28: #{tpu_custom_call.1} parent=1 // pred_region
      %797 = dma.done [#allocation5], 128
    $region29: #{tpu_custom_call.1} parent=1 // pred_fallthru
      _
    // Predicated region
    $region30: #{tpu_custom_call.1} parent=1 // pred_check
      _
    $region31: #{tpu_custom_call.1} parent=1 // pred_check_branch
      %799 = sbr.rel (0) target = $region33
    $region32: #{tpu_custom_call.1} parent=1 // pred_region
      %801 = dma.done [#allocation5], 256
    $region33: #{tpu_custom_call.1} parent=1 // pred_fallthru
      _
    %802 = vsyncpa [#allocation3], 1
    %803 = vsyncpa [#allocation5], 1

</llo_original>
